<compile_context>
chip_gen: v7x
topology: tpu7x:2x2x1
jax: 0.10.0
libtpu: 0.0.40
codegen_flags: <defaults>
</compile_context>

<pallas_src>
import functools

import jax
import jax.numpy as jnp
from jax import lax
from jax.experimental import pallas as pl
from jax.experimental.pallas import tpu as pltpu

VOCAB_SIZE = 65  # e.g. tiny-shakespeare character vocabulary
# TODO(synk): vocab_size in the PyTorch script comes from reading config.yaml / the
# dataset file; hardcoded here since the kernel cannot read files.


def _round_up(x: int, m: int) -> int:
    return ((x + m - 1) // m) * m


def _bigram_kernel(in_ref, table_ref, out_ref, *, vocab_size, compute_loss):
    """One row-tile of the bigram forward.

    in_ref:    (tile, 2) int32  [idx | target]   (or (tile, 1) when no targets)
    table_ref: (VP, VP) float32  zero-padded embedding table (resident in VMEM)
    out_ref:   (tile, VP) float32  lanes [0, V) = logits, lane V = per-row CE loss
    """
    V = vocab_size
    tile, VP = out_ref.shape

    lane = lax.broadcasted_iota(jnp.int32, (tile, VP), 1)        # (tile, VP)
    idx = in_ref[:, 0:1]                                         # (tile, 1)

    # Embedding lookup as a one-hot matmul on the MXU (table rows >= V are zero,
    # token ids are always < V, so padded rows are never selected).
    one_hot = (idx == lane).astype(jnp.float32)                  # (tile, VP)
    logits = jnp.dot(one_hot, table_ref[...],
                     preferred_element_type=jnp.float32)         # (tile, VP)

    if not compute_loss:
        out_ref[...] = logits
        return

    tgt = in_ref[:, 1:2]                                         # (tile, 1)

    # Cross entropy per row: logsumexp(logits[:V]) - logits[target].
    # Mask the padded lanes to -inf for the max/LSE (their exp contributes 0).
    masked = jnp.where(lane < V, logits, -jnp.inf)               # (tile, VP)
    row_max = jnp.max(masked, axis=-1, keepdims=True)            # (tile, 1)
    lse = jnp.log(jnp.sum(jnp.exp(masked - row_max),
                          axis=-1, keepdims=True)) + row_max     # (tile, 1)
    # Target logit without materializing a second float one-hot.
    target_logit = jnp.sum(jnp.where(tgt == lane, logits, 0.0),
                           axis=-1, keepdims=True)               # (tile, 1)
    per_row_loss = lse - target_logit                            # (tile, 1)

    # Fold the per-row loss into spare lane V of the lane-dense output so no
    # separate scalar output / sequential accumulator is needed.
    out_ref[...] = jnp.where(lane == V, per_row_loss, logits)


def bigram_forward(table, idx, targets=None, *, tile_rows=256):
    """Mirrors BigramLanguageModel.forward(idx, targets)."""
    B, T = idx.shape
    V = table.shape[0]
    BT = B * T

    compute_loss = targets is not None

    # Pad vocab to a lane-dense width, with at least one spare lane for the loss.
    VP = _round_up(V + 1, 128)

    # Row tile: >= 8 (sublane), up to `tile_rows` (fills the 256x256 MXU on v6e/v7x).
    tile = min(tile_rows, _round_up(BT, 8))
    BT_pad = _round_up(BT, tile)
    grid = (BT_pad // tile,)

    # Zero-pad the table (NOT -inf: 0 * -inf = NaN in the one-hot matmul).
    table_p = jnp.zeros((VP, VP), jnp.float32).at[:V, :V].set(
        table.astype(jnp.float32))

    idx_flat = idx.reshape(BT).astype(jnp.int32)
    if compute_loss:
        tgt_flat = targets.reshape(BT).astype(jnp.int32)
        packed = jnp.stack([idx_flat, tgt_flat], axis=-1)        # (BT, 2) single DMA
    else:
        packed = idx_flat[:, None]                               # (BT, 1)
    if BT_pad != BT:
        packed = jnp.pad(packed, ((0, BT_pad - BT), (0, 0)))     # padded rows: id 0
    ncols = packed.shape[1]

    kernel = functools.partial(_bigram_kernel,
                               vocab_size=V, compute_loss=compute_loss)

    out = pl.pallas_call(
        kernel,
        out_shape=jax.ShapeDtypeStruct((BT_pad, VP), jnp.float32),
        grid=grid,
        in_specs=[
            pl.BlockSpec((tile, ncols), lambda i: (i, 0)),
            pl.BlockSpec((VP, VP), lambda i: (0, 0)),            # table stays resident
        ],
        out_specs=pl.BlockSpec((tile, VP), lambda i: (i, 0)),
        compiler_params=pltpu.CompilerParams(
            dimension_semantics=("parallel",)),                  # independent row tiles
    )(packed, table_p)

    logits = out[:BT, :V]
    if not compute_loss:
        # PyTorch returns logits as (B, T, C) when targets is None.
        return logits.reshape(B, T, V), None
    # Per-row losses live in lane V; mean over the real (unpadded) rows in XLA.
    loss = jnp.mean(out[:BT, V])
    return logits, loss


def _reference(table, idx, targets):
    B, T = idx.shape
    V = table.shape[0]
    ref_logits = table[idx].reshape(B * T, V)
    log_probs = jax.nn.log_softmax(ref_logits, axis=-1)
    ref_loss = -jnp.mean(log_probs[jnp.arange(B * T), targets.reshape(-1)])
    return ref_logits, ref_loss


if __name__ == "__main__":
    key = jax.random.PRNGKey(0)
    V = VOCAB_SIZE

    # --- Small case matching the PyTorch toy shapes (B=2, T=8) -----------------
    k_table, k_idx, k_tgt, k_idx2, k_tgt2 = jax.random.split(key, 5)
    B, T = 2, 8
    table = jax.random.normal(k_table, (V, V), dtype=jnp.float32)  # nn.Embedding ~ N(0,1)
    idx = jax.random.randint(k_idx, (B, T), 0, V, dtype=jnp.int32)
    targets = jax.random.randint(k_tgt, (B, T), 0, V, dtype=jnp.int32)

    logits, loss = bigram_forward(table, idx, targets)
    jax.block_until_ready((logits, loss))

    logits_nt, loss_nt = bigram_forward(table, idx, None)
    jax.block_until_ready(logits_nt)
    assert loss_nt is None

    ref_logits, ref_loss = _reference(table, idx, targets)
    assert logits.shape == (B * T, V)
    assert logits_nt.shape == (B, T, V)
    assert jnp.allclose(logits, ref_logits, atol=1e-5, rtol=1e-5)
    assert jnp.allclose(logits_nt.reshape(B * T, V), ref_logits, atol=1e-5, rtol=1e-5)
    assert jnp.allclose(loss, ref_loss, atol=1e-5, rtol=1e-5)

    # --- Larger case exercising multi-tile grid + row padding (BT=300, tile=256) --
    B2, T2 = 3, 100
    idx2 = jax.random.randint(k_idx2, (B2, T2), 0, V, dtype=jnp.int32)
    targets2 = jax.random.randint(k_tgt2, (B2, T2), 0, V, dtype=jnp.int32)

    logits2, loss2 = bigram_forward(table, idx2, targets2)
    jax.block_until_ready((logits2, loss2))

    ref_logits2, ref_loss2 = _reference(table, idx2, targets2)
    assert logits2.shape == (B2 * T2, V)
    assert jnp.allclose(logits2, ref_logits2, atol=1e-5, rtol=1e-5)
    assert jnp.allclose(loss2, ref_loss2, atol=1e-5, rtol=1e-5)

    print("KERNEL_OK")
</pallas_src>

<mosaic_0001>
module attributes {stable_mosaic.version = 11 : i64} {
  func.func @_bigram_kernel(%arg0: i32, %arg1: memref<16x2xi32, #tpu.memory_space<vmem>>, %arg2: memref<128x128xf32, #tpu.memory_space<vmem>>, %arg3: memref<16x128xf32, #tpu.memory_space<vmem>>) attributes {dimension_semantics = [#tpu.dimension_semantics<parallel>], iteration_bounds = array<i64: 1>, scalar_prefetch = 0 : i64, scratch_operands = 0 : i64, tpu.core_type = #tpu.core_type<tc>, window_params = [{transform_indices = @transform_0, window_bounds = array<i64: 16, 2>}, {pipeline_mode = #tpu.pipeline_mode<synchronous>, transform_indices = @transform_1, window_bounds = array<i64: 128, 128>}, {transform_indices = @transform_2, window_bounds = array<i64: 16, 128>}]} {
    %0 = tpu.iota {dimensions = array<i32: 1>} : vector<16x128xi32>
    %c0 = arith.constant 0 : index
    %c0_0 = arith.constant 0 : index
    %1 = vector.load %arg1[%c0, %c0_0] : memref<16x2xi32, #tpu.memory_space<vmem>>, vector<16x1xi32>
    %2 = vector.broadcast %1 : vector<16x1xi32> to vector<16x128xi32>
    %3 = arith.cmpi eq, %2, %0 : vector<16x128xi32>
    %4 = arith.extui %3 : vector<16x128xi1> to vector<16x128xi32>
    %5 = arith.sitofp %4 : vector<16x128xi32> to vector<16x128xf32>
    %c0_1 = arith.constant 0 : index
    %c0_2 = arith.constant 0 : index
    %6 = vector.load %arg2[%c0_1, %c0_2] : memref<128x128xf32, #tpu.memory_space<vmem>>, vector<128x128xf32>
    %cst = arith.constant dense<0.000000e+00> : vector<16x128xf32>
    %7 = tpu.matmul %5, %6, %cst {dimension_numbers = #tpu.dot_dimension_numbers<[1], [0], [0], [1], [0, 0, 1, 1], [], []>} : vector<16x128xf32>, vector<128x128xf32>, vector<16x128xf32> -> vector<16x128xf32>
    %c0_3 = arith.constant 0 : index
    %c1 = arith.constant 1 : index
    %8 = vector.load %arg1[%c0_3, %c1] : memref<16x2xi32, #tpu.memory_space<vmem>>, vector<16x1xi32>
    %c65_i32 = arith.constant 65 : i32
    %9 = vector.broadcast %c65_i32 : i32 to vector<16x128xi32>
    %10 = arith.cmpi slt, %0, %9 : vector<16x128xi32>
    %cst_4 = arith.constant 0xFF800000 : f32
    %11 = vector.broadcast %cst_4 : f32 to vector<16x128xf32>
    %12 = arith.select %10, %7, %11 : vector<16x128xi1>, vector<16x128xf32>
    %cst_5 = arith.constant dense<0xFF800000> : vector<16xf32>
    %13 = vector.multi_reduction <maximumf>, %12, %cst_5 [1] : vector<16x128xf32> to vector<16xf32>
    %14 = vector.shape_cast %13 : vector<16xf32> to vector<16x1xf32>
    %15 = vector.broadcast %14 : vector<16x1xf32> to vector<16x128xf32>
    %16 = arith.subf %12, %15 : vector<16x128xf32>
    %17 = math.exp %16 : vector<16x128xf32>
    %cst_6 = arith.constant dense<0.000000e+00> : vector<16xf32>
    %18 = vector.multi_reduction <add>, %17, %cst_6 [1] : vector<16x128xf32> to vector<16xf32>
    %19 = vector.shape_cast %18 : vector<16xf32> to vector<16x1xf32>
    %20 = math.log %19 : vector<16x1xf32>
    %21 = arith.addf %20, %14 : vector<16x1xf32>
    %22 = vector.broadcast %8 : vector<16x1xi32> to vector<16x128xi32>
    %23 = arith.cmpi eq, %22, %0 : vector<16x128xi32>
    %cst_7 = arith.constant 0.000000e+00 : f32
    %24 = vector.broadcast %cst_7 : f32 to vector<16x128xf32>
    %25 = arith.select %23, %7, %24 : vector<16x128xi1>, vector<16x128xf32>
    %cst_8 = arith.constant dense<0.000000e+00> : vector<16xf32>
    %26 = vector.multi_reduction <add>, %25, %cst_8 [1] : vector<16x128xf32> to vector<16xf32>
    %27 = vector.shape_cast %26 : vector<16xf32> to vector<16x1xf32>
    %28 = arith.subf %21, %27 : vector<16x1xf32>
    %c65_i32_9 = arith.constant 65 : i32
    %29 = vector.broadcast %c65_i32_9 : i32 to vector<16x128xi32>
    %30 = arith.cmpi eq, %0, %29 : vector<16x128xi32>
    %31 = vector.shape_cast %28 : vector<16x1xf32> to vector<16x1xf32>
    %32 = vector.broadcast %31 : vector<16x1xf32> to vector<16x128xf32>
    %33 = arith.select %30, %32, %7 : vector<16x128xi1>, vector<16x128xf32>
    %c0_10 = arith.constant 0 : index
    %c0_11 = arith.constant 0 : index
    %34 = vector.load %arg3[%c0_10, %c0_11] : memref<16x128xf32, #tpu.memory_space<vmem>>, vector<16x128xf32>
    tpu.vector_store %arg3[%c0_10, %c0_11], %33 {strides = array<i32>} : memref<16x128xf32, #tpu.memory_space<vmem>>, vector<16x128xf32>,
    return
  }
  func.func @transform_0(%arg0: i32) -> (i32, i32) {
    %c0_i32 = arith.constant 0 : i32
    %c0_i32_0 = arith.constant 0 : i32
    return %arg0, %c0_i32 : i32, i32
  }
  func.func @transform_1(%arg0: i32) -> (i32, i32) {
    %c0_i32 = arith.constant 0 : i32
    %c0_i32_0 = arith.constant 0 : i32
    %c0_i32_1 = arith.constant 0 : i32
    return %c0_i32, %c0_i32_0 : i32, i32
  }
  func.func @transform_2(%arg0: i32) -> (i32, i32) {
    %c0_i32 = arith.constant 0 : i32
    %c0_i32_0 = arith.constant 0 : i32
    return %arg0, %c0_i32 : i32, i32
  }
}

</mosaic_0001>

<llo_original>
// kernel: tpu_custom_call.1
$region0: #{tpu_custom_call.1}
  #allocation0 [shape = 'u32[]', space=smem, size = 0x4, offset = 0x4, fixed_abs, tag = 'smem constant byte address 0x4 - core index']
  #allocation1 [shape = 'u32[144,128]{1,0:T(1,128)}', space=vmem, size = 0x12000, scoped, tag = 'internal scratch']
  %s0 = inlined_call_operand.vmem [shape: s32[16,2], index: 0, kind: input, shape index: {}]
  %s1 = inlined_call_operand.hbm [shape: f32[128,128], index: 1, kind: input, shape index: {}]
  %s2 = inlined_call_operand.hbm [shape: f32[16,128], index: 2, kind: output, shape index: {}]
  %s3 = sld [smem:[#allocation0]]
  $region22: #{tpu_custom_call.1} parent=0
    _
  %s5 = ssub.s32 1, %s3
  %s6 = scalar_select 0, %s5, %s3
  $region1: #{tpu_custom_call.1} parent=0
    #allocation2 [shape = 'u8[65536]{0}', space=vmem, size = 0x10000, scoped, tag = 'input window, operand 1, single buffered']
    #allocation3 [shape = 's32[1]{0}', space=sflag, size = 0x4, scoped, tag = 'scoped memory for tpu_custom_call.1']
    #allocation4 [shape = 's32[1]{0}', space=sflag, size = 0x4, scoped, tag = 'scoped memory for tpu_custom_call.1']
    #allocation5 [shape = 'u8[8192]{0}', space=vmem, size = 0x2000, scoped, tag = 'output window, operand 0, single buffered']
    %7 = vsyncpa [#allocation3], 0
    %8 = vsyncpa [#allocation4], 0
    // Predicated region
    $region2: #{tpu_custom_call.1} parent=1 // pred_check
      _
    $region3: #{tpu_custom_call.1} parent=1 // pred_check_branch
      %10 = sbr.rel (0) target = $region5
    $region4: #{tpu_custom_call.1} parent=1 // pred_region
      _
    $region5: #{tpu_custom_call.1} parent=1 // pred_fallthru
      _
    // Predicated region
    $region6: #{tpu_custom_call.1} parent=1 // pred_check
      _
    $region7: #{tpu_custom_call.1} parent=1 // pred_check_branch
      %12 = sbr.rel (0) target = $region9
    $region8: #{tpu_custom_call.1} parent=1 // pred_region
      %s14 = ssub.s32 2048, 2048
      %15 = vsyncadd [#allocation3], %s14
      %s16 = sshll.u32 [#allocation2], 4
      %s17 = int_to_ptr.vmem [resolvable:$true] %s16
      %22 = dma.hbm_to_vmem [thread:$0]  %s1, 2048, %s17, [#allocation3], 128, 128, 8
    $region9: #{tpu_custom_call.1} parent=1 // pred_fallthru
      _
    // Predicated region
    $region10: #{tpu_custom_call.1} parent=1 // pred_check
      _
    $region11: #{tpu_custom_call.1} parent=1 // pred_check_branch
      %24 = sbr.rel (0) target = $region13
    $region12: #{tpu_custom_call.1} parent=1 // pred_region
      %25 = dma.done [#allocation3], 2048
    $region13: #{tpu_custom_call.1} parent=1 // pred_fallthru
      _
    %v26 = vlaneseq
    %v27 = vand.u32 %v26, 127
    %v28 = vld [vmem:[%s0] sm:$0xff]
    %v29 = vld [vmem:[%s0 + $0x8] sm:$0xff]
    %30 = vset.pattern.permute.xlu0 0
    %31 = vperm.xlu0 %30, %v28
    %v32 = vpop.permute.xlu0 %31
    %33 = vset.pattern.permute.xlu0 0
    %34 = vperm.xlu0 %33, %v29
    %v35 = vpop.permute.xlu0 %34
    %vm36 = vcmp.eq.s32.totalorder %v32, %v27
    %vm37 = vcmp.eq.s32.totalorder %v35, %v27
    %v38 = vsel %vm36, 1, 0
    %v39 = vsel %vm37, 1, 0
    %v40 = vcvt.s32.f32 %v38
    %v41 = vcvt.s32.f32 %v39
    %v42 = vld [vmem:[#allocation2] sm:$0xff]
    %v43 = vld [vmem:[#allocation2 + $0x8] sm:$0xff]
    %v44 = vld [vmem:[#allocation2 + $0x10] sm:$0xff]
    %v45 = vld [vmem:[#allocation2 + $0x18] sm:$0xff]
    %v46 = vld [vmem:[#allocation2 + $0x20] sm:$0xff]
    %v47 = vld [vmem:[#allocation2 + $0x28] sm:$0xff]
    %v48 = vld [vmem:[#allocation2 + $0x30] sm:$0xff]
    %v49 = vld [vmem:[#allocation2 + $0x38] sm:$0xff]
    %v50 = vld [vmem:[#allocation2 + $0x40] sm:$0xff]
    %v51 = vld [vmem:[#allocation2 + $0x48] sm:$0xff]
    %v52 = vld [vmem:[#allocation2 + $0x50] sm:$0xff]
    %v53 = vld [vmem:[#allocation2 + $0x58] sm:$0xff]
    %v54 = vld [vmem:[#allocation2 + $0x60] sm:$0xff]
    %v55 = vld [vmem:[#allocation2 + $0x68] sm:$0xff]
    %v56 = vld [vmem:[#allocation2 + $0x70] sm:$0xff]
    %v57 = vld [vmem:[#allocation2 + $0x78] sm:$0xff]
    %58 = vmatprep.subr.mxu0 0.0
    %59 = vmatpush1.msra.mxu0 %v42
    %60 = vmatprep.subr.mxu0 0.0
    %61 = vmatpush1.msra.mxu0 %v43
    %62 = vmatprep.subr.mxu0 0.0
    %63 = vmatpush1.msra.mxu0 %v44
    %64 = vmatprep.subr.mxu0 0.0
    %65 = vmatpush1.msra.mxu0 %v45
    %66 = vmatprep.subr.mxu0 0.0
    %67 = vmatpush1.msra.mxu0 %v46
    %68 = vmatprep.subr.mxu0 0.0
    %69 = vmatpush1.msra.mxu0 %v47
    %70 = vmatprep.subr.mxu0 0.0
    %71 = vmatpush1.msra.mxu0 %v48
    %72 = vmatprep.subr.mxu0 0.0
    %73 = vmatpush1.msra.mxu0 %v49
    %74 = vmatprep.subr.mxu0 0.0
    %75 = vmatpush1.msra.mxu0 %v50
    %76 = vmatprep.subr.mxu0 0.0
    %77 = vmatpush1.msra.mxu0 %v51
    %78 = vmatprep.subr.mxu0 0.0
    %79 = vmatpush1.msra.mxu0 %v52
    %80 = vmatprep.subr.mxu0 0.0
    %81 = vmatpush1.msra.mxu0 %v53
    %82 = vmatprep.subr.mxu0 0.0
    %83 = vmatpush1.msra.mxu0 %v54
    %84 = vmatprep.subr.mxu0 0.0
    %85 = vmatpush1.msra.mxu0 %v55
    %86 = vmatprep.subr.mxu0 0.0
    %87 = vmatpush1.msra.mxu0 %v56
    %88 = vmatprep.subr.mxu0 0.0
    %89 = vmatpush1.msra.mxu0 %v57
    %90 = vmatprep.subr.mxu0 0.0
    %91 = vmatpush1.msra.mxu0 0.0
    %92 = vmatprep.subr.mxu0 0.0
    %93 = vmatpush1.msra.mxu0 0.0
    %94 = vmatprep.subr.mxu0 0.0
    %95 = vmatpush1.msra.mxu0 0.0
    %96 = vmatprep.subr.mxu0 0.0
    %97 = vmatpush1.msra.mxu0 0.0
    %98 = vmatprep.subr.mxu0 0.0
    %99 = vmatpush1.msra.mxu0 0.0
    %100 = vmatprep.subr.mxu0 0.0
    %101 = vmatpush1.msra.mxu0 0.0
    %102 = vmatprep.subr.mxu0 0.0
    %103 = vmatpush1.msra.mxu0 0.0
    %104 = vmatprep.subr.mxu0 0.0
    %105 = vmatpush1.msra.mxu0 0.0
    %106 = vmatprep.subr.mxu0 0.0
    %107 = vmatpush1.msra.mxu0 0.0
    %108 = vmatprep.subr.mxu0 0.0
    %109 = vmatpush1.msra.mxu0 0.0
    %110 = vmatprep.subr.mxu0 0.0
    %111 = vmatpush1.msra.mxu0 0.0
    %112 = vmatprep.subr.mxu0 0.0
    %113 = vmatpush1.msra.mxu0 0.0
    %114 = vmatprep.subr.mxu0 0.0
    %115 = vmatpush1.msra.mxu0 0.0
    %116 = vmatprep.subr.mxu0 0.0
    %117 = vmatpush1.msra.mxu0 0.0
    %118 = vmatprep.subr.mxu0 0.0
    %119 = vmatpush1.msra.mxu0 0.0
    %120 = vmatprep.subr.mxu0 0.0
    %121 = vmatpush1.msra.mxu0 0.0
    %122 = vmatprep.mubr.f32.mxu0 0.0
    %123 = vmatmul.mubr.f32.gmra.mrb[0].mxu0 %v40
    %v124 = vpop.f32.mrb[0].mxu0
    %v125 = vadd.f32 0.0, %v124
    %v126 = vpop.f32.mrb[0].mxu0
    %127 = vmatprep.mubr.f32.mxu0 0.0
    %128 = vmatmul.mubr.f32.gmra.mrb[0].mxu0 %v41
    %v129 = vpop.f32.mrb[0].mxu0
    %v130 = vadd.f32 0.0, %v129
    %v131 = vpop.f32.mrb[0].mxu0
    %132 = vdwg.mxu0
    %vm133 = vcmp.lt.s32.totalorder %v27, 65
    %v134 = vsel %vm133, %v125, -inf
    %v135 = vsel %vm133, %v130, -inf
    %136 = vmax.xlane.f32.xlu0 %v134
    %v137 = vpop.xlane.xlu0 %136
    %138 = vmax.xlane.f32.xlu0 %v135
    %v139 = vpop.xlane.xlu0 %138
    %v140 = vsub.f32 %v134, %v137
    %v141 = vsub.f32 %v135, %v139
    %v142 = vmul.f32 %v140, 1.442695
    %v143 = vpow.pop %v142
    %v144 = vmul.f32 %v141, 1.442695
    %v145 = vpow.pop %v144
    %146 = vadd.xlane.f32.xlu0 %v143
    %v147 = vpop.xlane.xlu0 %146
    %148 = vadd.xlane.f32.xlu0 %v145
    %v149 = vpop.xlane.xlu0 %148
    %v150 = vlog2.pop %v147
    %v151 = vmul.f32 %v150, 0.6931472
    %v152 = vlog2.pop %v149
    %v153 = vmul.f32 %v152, 0.6931472
    %v154 = vadd.f32 %v151, %v137
    %v155 = vadd.f32 %v153, %v139
    %156 = vset.pattern.permute.xlu0 1
    %157 = vperm.xlu0 %156, %v28
    %v158 = vpop.permute.xlu0 %157
    %159 = vset.pattern.permute.xlu0 1
    %160 = vperm.xlu0 %159, %v29
    %v161 = vpop.permute.xlu0 %160
    %vm162 = vcmp.eq.s32.totalorder %v158, %v27
    %vm163 = vcmp.eq.s32.totalorder %v161, %v27
    %v164 = vsel %vm162, %v125, 0.0
    %v165 = vsel %vm163, %v130, 0.0
    %166 = vadd.xlane.f32.xlu0 %v164
    %v167 = vpop.xlane.xlu0 %166
    %168 = vadd.xlane.f32.xlu0 %v165
    %v169 = vpop.xlane.xlu0 %168
    %v170 = vsub.f32 %v154, %v167
    %v171 = vsub.f32 %v155, %v169
    %vm172 = vcmp.eq.s32.totalorder %v27, 65
    %v173 = vsel %vm172, %v170, %v125
    %v174 = vsel %vm172, %v171, %v130
    %175 = vst [vmem:[#allocation5] sm:$0xff] %v173
    %176 = vst [vmem:[#allocation5 + $0x8] sm:$0xff] %v174
    // Predicated region
    $region14: #{tpu_custom_call.1} parent=1 // pred_check
      _
    $region15: #{tpu_custom_call.1} parent=1 // pred_check_branch
      %178 = sbr.rel (0) target = $region17
    $region16: #{tpu_custom_call.1} parent=1 // pred_region
      %s180 = ssub.s32 256, 256
      %181 = vsyncadd [#allocation4], %s180
      %s182 = sshll.u32 [#allocation5], 4
      %s183 = int_to_ptr.vmem [resolvable:$true] %s182
      %188 = dma.vmem_to_hbm [thread:$0]  %s183, 256, %s2, [#allocation4], 128, 128, 8
    $region17: #{tpu_custom_call.1} parent=1 // pred_fallthru
      _
    // Predicated region
    $region18: #{tpu_custom_call.1} parent=1 // pred_check
      _
    $region19: #{tpu_custom_call.1} parent=1 // pred_check_branch
      %190 = sbr.rel (0) target = $region21
    $region20: #{tpu_custom_call.1} parent=1 // pred_region
      %191 = dma.done [#allocation4], 256
    $region21: #{tpu_custom_call.1} parent=1 // pred_fallthru
      _
    %192 = vsyncpa [#allocation3], 1
    %193 = vsyncpa [#allocation4], 1

</llo_original>
